<compile_context>
chip_gen: v5e
topology: v5e:2x2
jax: 0.10.0
libtpu: 0.0.40
codegen_flags: <defaults>
</compile_context>

<pallas_src>
import functools

import numpy as np

import jax
import jax.numpy as jnp
from jax import lax
from jax.experimental import pallas as pl
from jax.experimental.pallas import tpu as pltpu


# --------------------------- fused bottleneck kernel -------------------------
def _bottleneck_kernel(x_ref, g1_ref, b1_ref, w1_ref, g2_ref, b2_ref, w2_ref,
                       mask_ref, out_ref, *, eps, W):
    # Shapes (channel-major, lane-dense):
    #   x_ref:   (B, Cin, HW)      g1/b1: (1, Cin, 1)    w1: (C1, Cin)
    #   g2/b2:   (1, C1, 1)        w2:    (9*G, C1)      mask: (9, 1, HW)
    #   out_ref: (B, G, HW)
    B, Cin, HW = x_ref.shape
    C1 = w1_ref.shape[0]
    G = out_ref.shape[1]
    inv_n = 1.0 / (B * HW)

    def channel_moments(t):
        # Per-channel mean / biased variance over batch+spatial.  Lane reduce
        # (XLU) + tiny cross-batch add; centered form kept (no E[x^2]-E[x]^2).
        s = jnp.sum(jnp.sum(t, axis=2, keepdims=True), axis=0, keepdims=True)
        m = s * inv_n
        d = t - m
        v = jnp.sum(jnp.sum(d * d, axis=2, keepdims=True), axis=0,
                    keepdims=True) * inv_n
        return m, v                                       # (1, C, 1) each

    def fold_bn(gamma, beta, m, v):
        scale = gamma / jnp.sqrt(v + eps)
        return scale, beta - m * scale

    def bmm(w, t):
        # (O, C) x (B, C, P) -> (B, O, P); batched MXU matmul, no transposes.
        wb = jnp.broadcast_to(w, (t.shape[0],) + w.shape)
        return lax.dot_general(wb, t, (((2,), (1,)), ((0,), (0,))),
                               preferred_element_type=jnp.float32)

    # ---- BN1 (batch stats) + ReLU + 1x1 conv --------------------------------
    x = x_ref[...]
    m1, v1 = channel_moments(x)
    s1, o1 = fold_bn(g1_ref[...], b1_ref[...], m1, v1)
    h = jnp.maximum(x * s1 + o1, 0.0)
    y1 = bmm(w1_ref[...], h)                              # (B, C1, HW)

    # ---- BN2 (batch stats, y1 never leaves registers) + ReLU ----------------
    m2, v2 = channel_moments(y1)
    s2, o2 = fold_bn(g2_ref[...], b2_ref[...], m2, v2)
    z = jnp.maximum(y1 * s2 + o2, 0.0)                    # (B, C1, HW)

    # ---- 3x3 "same" conv: dual im2col form -----------------------------------
    # One matmul produces all 9 tap responses; each tap is then shifted to its
    # output pixel with a static lane-roll and zeroed at the image border with
    # a precomputed mask.  No padded scratch, no patch buffer, no masked stores.
    taps = bmm(w2_ref[...], z)                            # (B, 9*G, HW)
    acc = jnp.zeros((B, G, HW), jnp.float32)
    for dy in (-1, 0, 1):
        for dx in (-1, 0, 1):
            k = (dy + 1) * 3 + (dx + 1)
            t = taps[:, k * G:(k + 1) * G, :]             # 8-aligned sublane slice
            if dy == 0 and dx == 0:
                acc = acc + t
            else:
                s = dy * W + dx
                ts = pltpu.roll(t, shift=(-s) % HW, axis=2)   # ts[p] = t[p + s]
                acc = acc + ts * mask_ref[k]
    out_ref[...] = acc


# ------------------------------ wrapper --------------------------------------
def bottleneck_forward(x_nchw, gamma1, beta1, w1_oihw, gamma2, beta2, w2_oihw,
                       eps=1e-5):
    N, Cin, H, W = x_nchw.shape
    C1 = w1_oihw.shape[0]          # 4 * growth_rate
    G = w2_oihw.shape[0]           # growth_rate
    HW = H * W

    x_f32 = x_nchw.astype(jnp.float32)
    x3 = x_f32.reshape(N, Cin, HW)                        # free view of NCHW

    g1 = gamma1.reshape(1, Cin, 1).astype(jnp.float32)
    b1 = beta1.reshape(1, Cin, 1).astype(jnp.float32)
    g2 = gamma2.reshape(1, C1, 1).astype(jnp.float32)
    b2 = beta2.reshape(1, C1, 1).astype(jnp.float32)

    # conv1 weight: (C1, Cin, 1, 1) -> (C1, Cin) (used as-is, channel-major)
    w1 = w1_oihw[:, :, 0, 0].astype(jnp.float32)
    # conv2 weight: (G, C1, 3, 3) -> (ky, kx, G, C1) -> (9*G, C1); tap k=ky*3+kx
    w2 = jnp.transpose(w2_oihw, (2, 3, 0, 1)).reshape(9 * G, C1).astype(jnp.float32)

    # Compile-time border masks for the 9 taps (1.0 = neighbour inside image).
    yy, xx = np.mgrid[0:H, 0:W]
    masks_np = np.empty((9, 1, HW), np.float32)
    for dy in (-1, 0, 1):
        for dx in (-1, 0, 1):
            k = (dy + 1) * 3 + (dx + 1)
            valid = ((yy + dy >= 0) & (yy + dy < H) &
                     (xx + dx >= 0) & (xx + dx < W))
            masks_np[k, 0, :] = valid.reshape(-1).astype(np.float32)
    masks = jnp.asarray(masks_np)

    # Whole problem fits in VMEM -> single fused kernel, no grid / pipelining.
    y2 = pl.pallas_call(
        functools.partial(_bottleneck_kernel, eps=eps, W=W),
        out_shape=jax.ShapeDtypeStruct((N, G, HW), jnp.float32),
        compiler_params=pltpu.CompilerParams(
            vmem_limit_bytes=32 * 1024 * 1024),
    )(x3, g1, b1, w1, g2, b2, w2, masks)

    # torch.cat([out, x], dim=1): the channel-major layout was preserved end to
    # end, so reshaping y2 back to NCHW is free; only the concat touches HBM.
    return jnp.concatenate([y2.reshape(N, G, H, W), x_f32], axis=1)


# ------------------------- pure-JAX reference (NCHW) --------------------------
def bottleneck_reference(x, gamma1, beta1, w1, gamma2, beta2, w2, eps=1e-5):
    def bn(t, g, b):
        m = jnp.mean(t, axis=(0, 2, 3), keepdims=True)
        v = jnp.var(t, axis=(0, 2, 3), keepdims=True)
        return (t - m) / jnp.sqrt(v + eps) * g.reshape(1, -1, 1, 1) \
            + b.reshape(1, -1, 1, 1)

    h = jax.nn.relu(bn(x, gamma1, beta1))
    y1 = jax.lax.conv_general_dilated(
        h, w1, (1, 1), 'VALID', dimension_numbers=('NCHW', 'OIHW', 'NCHW'))
    z = jax.nn.relu(bn(y1, gamma2, beta2))
    y2 = jax.lax.conv_general_dilated(
        z, w2, (1, 1), [(1, 1), (1, 1)],
        dimension_numbers=('NCHW', 'OIHW', 'NCHW'))
    return jnp.concatenate([y2, x], axis=1)


if __name__ == "__main__":
    # Bottleneck(in_planes=16, growth_rate=8): conv1: 16->32, conv2: 32->8
    N, Cin, H, W = 2, 16, 16, 16
    growth = 8
    C1 = 4 * growth

    keys = jax.random.split(jax.random.PRNGKey(0), 7)
    x = jax.random.normal(keys[0], (N, Cin, H, W), jnp.float32)
    gamma1 = 1.0 + 0.1 * jax.random.normal(keys[1], (Cin,), jnp.float32)
    beta1 = 0.1 * jax.random.normal(keys[2], (Cin,), jnp.float32)
    w1 = 0.1 * jax.random.normal(keys[3], (C1, Cin, 1, 1), jnp.float32)
    gamma2 = 1.0 + 0.1 * jax.random.normal(keys[4], (C1,), jnp.float32)
    beta2 = 0.1 * jax.random.normal(keys[5], (C1,), jnp.float32)
    w2 = 0.1 * jax.random.normal(keys[6], (growth, C1, 3, 3), jnp.float32)

    fwd = jax.jit(bottleneck_forward)
    out = fwd(x, gamma1, beta1, w1, gamma2, beta2, w2)
    out = jax.block_until_ready(out)

    ref = bottleneck_reference(x, gamma1, beta1, w1, gamma2, beta2, w2)
    ref = jax.block_until_ready(ref)

    assert out.shape == (N, growth + Cin, H, W), out.shape
    assert jnp.allclose(out, ref, rtol=2e-4, atol=2e-4), \
        float(jnp.max(jnp.abs(out - ref)))

    print("KERNEL_OK")
</pallas_src>

<mosaic_0001>
module attributes {stable_mosaic.version = 11 : i64} {
  func.func @_bottleneck_kernel(%arg0: memref<2x16x256xf32, #tpu.memory_space<vmem>>, %arg1: memref<1x16x1xf32, #tpu.memory_space<vmem>>, %arg2: memref<1x16x1xf32, #tpu.memory_space<vmem>>, %arg3: memref<32x16xf32, #tpu.memory_space<vmem>>, %arg4: memref<1x32x1xf32, #tpu.memory_space<vmem>>, %arg5: memref<1x32x1xf32, #tpu.memory_space<vmem>>, %arg6: memref<72x32xf32, #tpu.memory_space<vmem>>, %arg7: memref<9x1x256xf32, #tpu.memory_space<vmem>>, %arg8: memref<2x8x256xf32, #tpu.memory_space<vmem>>) attributes {dimension_semantics = [], scalar_prefetch = 0 : i64, scratch_operands = 0 : i64, tpu.core_type = #tpu.core_type<tc>} {
    %c0 = arith.constant 0 : index
    %c0_0 = arith.constant 0 : index
    %c0_1 = arith.constant 0 : index
    %0 = vector.load %arg0[%c0, %c0_0, %c0_1] : memref<2x16x256xf32, #tpu.memory_space<vmem>>, vector<2x16x256xf32>
    %cst = arith.constant dense<0.000000e+00> : vector<2x16xf32>
    %1 = vector.multi_reduction <add>, %0, %cst [2] : vector<2x16x256xf32> to vector<2x16xf32>
    %2 = vector.shape_cast %1 : vector<2x16xf32> to vector<2x16x1xf32>
    %cst_2 = arith.constant dense<0.000000e+00> : vector<16x1xf32>
    %3 = vector.multi_reduction <add>, %2, %cst_2 [0] : vector<2x16x1xf32> to vector<16x1xf32>
    %4 = vector.shape_cast %3 : vector<16x1xf32> to vector<1x16x1xf32>
    %cst_3 = arith.constant 0.001953125 : f32
    %5 = vector.broadcast %cst_3 : f32 to vector<1x16x1xf32>
    %6 = arith.mulf %4, %5 : vector<1x16x1xf32>
    %7 = vector.broadcast %6 : vector<1x16x1xf32> to vector<2x16x256xf32>
    %8 = arith.subf %0, %7 : vector<2x16x256xf32>
    %9 = arith.mulf %8, %8 : vector<2x16x256xf32>
    %cst_4 = arith.constant dense<0.000000e+00> : vector<2x16xf32>
    %10 = vector.multi_reduction <add>, %9, %cst_4 [2] : vector<2x16x256xf32> to vector<2x16xf32>
    %11 = vector.shape_cast %10 : vector<2x16xf32> to vector<2x16x1xf32>
    %cst_5 = arith.constant dense<0.000000e+00> : vector<16x1xf32>
    %12 = vector.multi_reduction <add>, %11, %cst_5 [0] : vector<2x16x1xf32> to vector<16x1xf32>
    %13 = vector.shape_cast %12 : vector<16x1xf32> to vector<1x16x1xf32>
    %cst_6 = arith.constant 0.001953125 : f32
    %14 = vector.broadcast %cst_6 : f32 to vector<1x16x1xf32>
    %15 = arith.mulf %13, %14 : vector<1x16x1xf32>
    %c0_7 = arith.constant 0 : index
    %c0_8 = arith.constant 0 : index
    %c0_9 = arith.constant 0 : index
    %16 = vector.load %arg1[%c0_7, %c0_8, %c0_9] : memref<1x16x1xf32, #tpu.memory_space<vmem>>, vector<1x16x1xf32>
    %c0_10 = arith.constant 0 : index
    %c0_11 = arith.constant 0 : index
    %c0_12 = arith.constant 0 : index
    %17 = vector.load %arg2[%c0_10, %c0_11, %c0_12] : memref<1x16x1xf32, #tpu.memory_space<vmem>>, vector<1x16x1xf32>
    %cst_13 = arith.constant 9.99999974E-6 : f32
    %18 = vector.broadcast %cst_13 : f32 to vector<1x16x1xf32>
    %19 = arith.addf %15, %18 : vector<1x16x1xf32>
    %20 = math.sqrt %19 : vector<1x16x1xf32>
    %21 = arith.divf %16, %20 : vector<1x16x1xf32>
    %22 = arith.mulf %6, %21 : vector<1x16x1xf32>
    %23 = arith.subf %17, %22 : vector<1x16x1xf32>
    %24 = vector.broadcast %21 : vector<1x16x1xf32> to vector<2x16x256xf32>
    %25 = arith.mulf %0, %24 : vector<2x16x256xf32>
    %26 = vector.broadcast %23 : vector<1x16x1xf32> to vector<2x16x256xf32>
    %27 = arith.addf %25, %26 : vector<2x16x256xf32>
    %cst_14 = arith.constant 0.000000e+00 : f32
    %28 = vector.broadcast %cst_14 : f32 to vector<2x16x256xf32>
    %29 = arith.maximumf %27, %28 : vector<2x16x256xf32>
    %c0_15 = arith.constant 0 : index
    %c0_16 = arith.constant 0 : index
    %30 = vector.load %arg3[%c0_15, %c0_16] : memref<32x16xf32, #tpu.memory_space<vmem>>, vector<32x16xf32>
    %31 = vector.shape_cast %30 : vector<32x16xf32> to vector<1x32x16xf32>
    %32 = vector.broadcast %31 : vector<1x32x16xf32> to vector<2x32x16xf32>
    %cst_17 = arith.constant dense<0.000000e+00> : vector<2x32x256xf32>
    %33 = tpu.matmul %32, %29, %cst_17 {dimension_numbers = #tpu.dot_dimension_numbers<[2], [1], [1], [2], [0, 0, 0, 1, 1, 2], [0], [0]>} : vector<2x32x16xf32>, vector<2x16x256xf32>, vector<2x32x256xf32> -> vector<2x32x256xf32>
    %cst_18 = arith.constant dense<0.000000e+00> : vector<2x32xf32>
    %34 = vector.multi_reduction <add>, %33, %cst_18 [2] : vector<2x32x256xf32> to vector<2x32xf32>
    %35 = vector.shape_cast %34 : vector<2x32xf32> to vector<2x32x1xf32>
    %cst_19 = arith.constant dense<0.000000e+00> : vector<32x1xf32>
    %36 = vector.multi_reduction <add>, %35, %cst_19 [0] : vector<2x32x1xf32> to vector<32x1xf32>
    %37 = vector.shape_cast %36 : vector<32x1xf32> to vector<1x32x1xf32>
    %cst_20 = arith.constant 0.001953125 : f32
    %38 = vector.broadcast %cst_20 : f32 to vector<1x32x1xf32>
    %39 = arith.mulf %37, %38 : vector<1x32x1xf32>
    %40 = vector.broadcast %39 : vector<1x32x1xf32> to vector<2x32x256xf32>
    %41 = arith.subf %33, %40 : vector<2x32x256xf32>
    %42 = arith.mulf %41, %41 : vector<2x32x256xf32>
    %cst_21 = arith.constant dense<0.000000e+00> : vector<2x32xf32>
    %43 = vector.multi_reduction <add>, %42, %cst_21 [2] : vector<2x32x256xf32> to vector<2x32xf32>
    %44 = vector.shape_cast %43 : vector<2x32xf32> to vector<2x32x1xf32>
    %cst_22 = arith.constant dense<0.000000e+00> : vector<32x1xf32>
    %45 = vector.multi_reduction <add>, %44, %cst_22 [0] : vector<2x32x1xf32> to vector<32x1xf32>
    %46 = vector.shape_cast %45 : vector<32x1xf32> to vector<1x32x1xf32>
    %cst_23 = arith.constant 0.001953125 : f32
    %47 = vector.broadcast %cst_23 : f32 to vector<1x32x1xf32>
    %48 = arith.mulf %46, %47 : vector<1x32x1xf32>
    %c0_24 = arith.constant 0 : index
    %c0_25 = arith.constant 0 : index
    %c0_26 = arith.constant 0 : index
    %49 = vector.load %arg4[%c0_24, %c0_25, %c0_26] : memref<1x32x1xf32, #tpu.memory_space<vmem>>, vector<1x32x1xf32>
    %c0_27 = arith.constant 0 : index
    %c0_28 = arith.constant 0 : index
    %c0_29 = arith.constant 0 : index
    %50 = vector.load %arg5[%c0_27, %c0_28, %c0_29] : memref<1x32x1xf32, #tpu.memory_space<vmem>>, vector<1x32x1xf32>
    %cst_30 = arith.constant 9.99999974E-6 : f32
    %51 = vector.broadcast %cst_30 : f32 to vector<1x32x1xf32>
    %52 = arith.addf %48, %51 : vector<1x32x1xf32>
    %53 = math.sqrt %52 : vector<1x32x1xf32>
    %54 = arith.divf %49, %53 : vector<1x32x1xf32>
    %55 = arith.mulf %39, %54 : vector<1x32x1xf32>
    %56 = arith.subf %50, %55 : vector<1x32x1xf32>
    %57 = vector.broadcast %54 : vector<1x32x1xf32> to vector<2x32x256xf32>
    %58 = arith.mulf %33, %57 : vector<2x32x256xf32>
    %59 = vector.broadcast %56 : vector<1x32x1xf32> to vector<2x32x256xf32>
    %60 = arith.addf %58, %59 : vector<2x32x256xf32>
    %cst_31 = arith.constant 0.000000e+00 : f32
    %61 = vector.broadcast %cst_31 : f32 to vector<2x32x256xf32>
    %62 = arith.maximumf %60, %61 : vector<2x32x256xf32>
    %c0_32 = arith.constant 0 : index
    %c0_33 = arith.constant 0 : index
    %63 = vector.load %arg6[%c0_32, %c0_33] : memref<72x32xf32, #tpu.memory_space<vmem>>, vector<72x32xf32>
    %64 = vector.shape_cast %63 : vector<72x32xf32> to vector<1x72x32xf32>
    %65 = vector.broadcast %64 : vector<1x72x32xf32> to vector<2x72x32xf32>
    %cst_34 = arith.constant dense<0.000000e+00> : vector<2x72x256xf32>
    %66 = tpu.matmul %65, %62, %cst_34 {dimension_numbers = #tpu.dot_dimension_numbers<[2], [1], [1], [2], [0, 0, 0, 1, 1, 2], [0], [0]>} : vector<2x72x32xf32>, vector<2x32x256xf32>, vector<2x72x256xf32> -> vector<2x72x256xf32>
    %cst_35 = arith.constant 0.000000e+00 : f32
    %67 = vector.broadcast %cst_35 : f32 to vector<2x8x256xf32>
    %68 = vector.extract_strided_slice %66 {offsets = [0, 0, 0], sizes = [2, 8, 256], strides = [1, 1, 1]} : vector<2x72x256xf32> to vector<2x8x256xf32>
    %c17_i32 = arith.constant 17 : i32
    %69 = tpu.dynamic_rotate %68 by %c17_i32 dim 2 : vector<2x8x256xf32>, i32 -> vector<2x8x256xf32>
    %c0_36 = arith.constant 0 : index
    %c0_37 = arith.constant 0 : index
    %c0_38 = arith.constant 0 : index
    %70 = vector.load %arg7[%c0_36, %c0_37, %c0_38] : memref<9x1x256xf32, #tpu.memory_space<vmem>>, vector<1x1x256xf32>
    %71 = vector.shape_cast %70 : vector<1x1x256xf32> to vector<1x256xf32>
    %72 = vector.shape_cast %71 : vector<1x256xf32> to vector<1x1x256xf32>
    %73 = vector.broadcast %72 : vector<1x1x256xf32> to vector<2x8x256xf32>
    %74 = arith.mulf %69, %73 : vector<2x8x256xf32>
    %75 = arith.addf %67, %74 : vector<2x8x256xf32>
    %76 = vector.extract_strided_slice %66 {offsets = [0, 8, 0], sizes = [2, 8, 256], strides = [1, 1, 1]} : vector<2x72x256xf32> to vector<2x8x256xf32>
    %c16_i32 = arith.constant 16 : i32
    %77 = tpu.dynamic_rotate %76 by %c16_i32 dim 2 : vector<2x8x256xf32>, i32 -> vector<2x8x256xf32>
    %c1 = arith.constant 1 : index
    %c0_39 = arith.constant 0 : index
    %c0_40 = arith.constant 0 : index
    %78 = vector.load %arg7[%c1, %c0_39, %c0_40] : memref<9x1x256xf32, #tpu.memory_space<vmem>>, vector<1x1x256xf32>
    %79 = vector.shape_cast %78 : vector<1x1x256xf32> to vector<1x256xf32>
    %80 = vector.shape_cast %79 : vector<1x256xf32> to vector<1x1x256xf32>
    %81 = vector.broadcast %80 : vector<1x1x256xf32> to vector<2x8x256xf32>
    %82 = arith.mulf %77, %81 : vector<2x8x256xf32>
    %83 = arith.addf %75, %82 : vector<2x8x256xf32>
    %84 = vector.extract_strided_slice %66 {offsets = [0, 16, 0], sizes = [2, 8, 256], strides = [1, 1, 1]} : vector<2x72x256xf32> to vector<2x8x256xf32>
    %c15_i32 = arith.constant 15 : i32
    %85 = tpu.dynamic_rotate %84 by %c15_i32 dim 2 : vector<2x8x256xf32>, i32 -> vector<2x8x256xf32>
    %c2 = arith.constant 2 : index
    %c0_41 = arith.constant 0 : index
    %c0_42 = arith.constant 0 : index
    %86 = vector.load %arg7[%c2, %c0_41, %c0_42] : memref<9x1x256xf32, #tpu.memory_space<vmem>>, vector<1x1x256xf32>
    %87 = vector.shape_cast %86 : vector<1x1x256xf32> to vector<1x256xf32>
    %88 = vector.shape_cast %87 : vector<1x256xf32> to vector<1x1x256xf32>
    %89 = vector.broadcast %88 : vector<1x1x256xf32> to vector<2x8x256xf32>
    %90 = arith.mulf %85, %89 : vector<2x8x256xf32>
    %91 = arith.addf %83, %90 : vector<2x8x256xf32>
    %92 = vector.extract_strided_slice %66 {offsets = [0, 24, 0], sizes = [2, 8, 256], strides = [1, 1, 1]} : vector<2x72x256xf32> to vector<2x8x256xf32>
    %c1_i32 = arith.constant 1 : i32
    %93 = tpu.dynamic_rotate %92 by %c1_i32 dim 2 : vector<2x8x256xf32>, i32 -> vector<2x8x256xf32>
    %c3 = arith.constant 3 : index
    %c0_43 = arith.constant 0 : index
    %c0_44 = arith.constant 0 : index
    %94 = vector.load %arg7[%c3, %c0_43, %c0_44] : memref<9x1x256xf32, #tpu.memory_space<vmem>>, vector<1x1x256xf32>
    %95 = vector.shape_cast %94 : vector<1x1x256xf32> to vector<1x256xf32>
    %96 = vector.shape_cast %95 : vector<1x256xf32> to vector<1x1x256xf32>
    %97 = vector.broadcast %96 : vector<1x1x256xf32> to vector<2x8x256xf32>
    %98 = arith.mulf %93, %97 : vector<2x8x256xf32>
    %99 = arith.addf %91, %98 : vector<2x8x256xf32>
    %100 = vector.extract_strided_slice %66 {offsets = [0, 32, 0], sizes = [2, 8, 256], strides = [1, 1, 1]} : vector<2x72x256xf32> to vector<2x8x256xf32>
    %101 = arith.addf %99, %100 : vector<2x8x256xf32>
    %102 = vector.extract_strided_slice %66 {offsets = [0, 40, 0], sizes = [2, 8, 256], strides = [1, 1, 1]} : vector<2x72x256xf32> to vector<2x8x256xf32>
    %c255_i32 = arith.constant 255 : i32
    %103 = tpu.dynamic_rotate %102 by %c255_i32 dim 2 : vector<2x8x256xf32>, i32 -> vector<2x8x256xf32>
    %c5 = arith.constant 5 : index
    %c0_45 = arith.constant 0 : index
    %c0_46 = arith.constant 0 : index
    %104 = vector.load %arg7[%c5, %c0_45, %c0_46] : memref<9x1x256xf32, #tpu.memory_space<vmem>>, vector<1x1x256xf32>
    %105 = vector.shape_cast %104 : vector<1x1x256xf32> to vector<1x256xf32>
    %106 = vector.shape_cast %105 : vector<1x256xf32> to vector<1x1x256xf32>
    %107 = vector.broadcast %106 : vector<1x1x256xf32> to vector<2x8x256xf32>
    %108 = arith.mulf %103, %107 : vector<2x8x256xf32>
    %109 = arith.addf %101, %108 : vector<2x8x256xf32>
    %110 = vector.extract_strided_slice %66 {offsets = [0, 48, 0], sizes = [2, 8, 256], strides = [1, 1, 1]} : vector<2x72x256xf32> to vector<2x8x256xf32>
    %c241_i32 = arith.constant 241 : i32
    %111 = tpu.dynamic_rotate %110 by %c241_i32 dim 2 : vector<2x8x256xf32>, i32 -> vector<2x8x256xf32>
    %c6 = arith.constant 6 : index
    %c0_47 = arith.constant 0 : index
    %c0_48 = arith.constant 0 : index
    %112 = vector.load %arg7[%c6, %c0_47, %c0_48] : memref<9x1x256xf32, #tpu.memory_space<vmem>>, vector<1x1x256xf32>
    %113 = vector.shape_cast %112 : vector<1x1x256xf32> to vector<1x256xf32>
    %114 = vector.shape_cast %113 : vector<1x256xf32> to vector<1x1x256xf32>
    %115 = vector.broadcast %114 : vector<1x1x256xf32> to vector<2x8x256xf32>
    %116 = arith.mulf %111, %115 : vector<2x8x256xf32>
    %117 = arith.addf %109, %116 : vector<2x8x256xf32>
    %118 = vector.extract_strided_slice %66 {offsets = [0, 56, 0], sizes = [2, 8, 256], strides = [1, 1, 1]} : vector<2x72x256xf32> to vector<2x8x256xf32>
    %c240_i32 = arith.constant 240 : i32
    %119 = tpu.dynamic_rotate %118 by %c240_i32 dim 2 : vector<2x8x256xf32>, i32 -> vector<2x8x256xf32>
    %c7 = arith.constant 7 : index
    %c0_49 = arith.constant 0 : index
    %c0_50 = arith.constant 0 : index
    %120 = vector.load %arg7[%c7, %c0_49, %c0_50] : memref<9x1x256xf32, #tpu.memory_space<vmem>>, vector<1x1x256xf32>
    %121 = vector.shape_cast %120 : vector<1x1x256xf32> to vector<1x256xf32>
    %122 = vector.shape_cast %121 : vector<1x256xf32> to vector<1x1x256xf32>
    %123 = vector.broadcast %122 : vector<1x1x256xf32> to vector<2x8x256xf32>
    %124 = arith.mulf %119, %123 : vector<2x8x256xf32>
    %125 = arith.addf %117, %124 : vector<2x8x256xf32>
    %126 = vector.extract_strided_slice %66 {offsets = [0, 64, 0], sizes = [2, 8, 256], strides = [1, 1, 1]} : vector<2x72x256xf32> to vector<2x8x256xf32>
    %c239_i32 = arith.constant 239 : i32
    %127 = tpu.dynamic_rotate %126 by %c239_i32 dim 2 : vector<2x8x256xf32>, i32 -> vector<2x8x256xf32>
    %c8 = arith.constant 8 : index
    %c0_51 = arith.constant 0 : index
    %c0_52 = arith.constant 0 : index
    %128 = vector.load %arg7[%c8, %c0_51, %c0_52] : memref<9x1x256xf32, #tpu.memory_space<vmem>>, vector<1x1x256xf32>
    %129 = vector.shape_cast %128 : vector<1x1x256xf32> to vector<1x256xf32>
    %130 = vector.shape_cast %129 : vector<1x256xf32> to vector<1x1x256xf32>
    %131 = vector.broadcast %130 : vector<1x1x256xf32> to vector<2x8x256xf32>
    %132 = arith.mulf %127, %131 : vector<2x8x256xf32>
    %133 = arith.addf %125, %132 : vector<2x8x256xf32>
    %c0_53 = arith.constant 0 : index
    %c0_54 = arith.constant 0 : index
    %c0_55 = arith.constant 0 : index
    %134 = vector.load %arg8[%c0_53, %c0_54, %c0_55] : memref<2x8x256xf32, #tpu.memory_space<vmem>>, vector<2x8x256xf32>
    tpu.vector_store %arg8[%c0_53, %c0_54, %c0_55], %133 {strides = array<i32>} : memref<2x8x256xf32, #tpu.memory_space<vmem>>, vector<2x8x256xf32>,
    return
  }
}

</mosaic_0001>

<llo_original>
// kernel: bottleneck_forward.1
$region0: #{bottleneck_forward.1}
  #allocation0 [shape = 'u32[]', space=smem, size = 0x4, offset = 0x4, fixed_abs, tag = 'smem constant byte address 0x4 - core index']
  #allocation1 [shape = 'u32[72,128]{1,0:T(1,128)}', space=vmem, size = 0x9000, scoped, tag = 'internal scratch']
  %s0 = inlined_call_operand.vmem [shape: f32[2,16,256], index: 0, kind: input, shape index: {}]
  %s1 = inlined_call_operand.vmem [shape: f32[1,16,1], index: 1, kind: input, shape index: {}]
  %s2 = inlined_call_operand.vmem [shape: f32[1,16,1], index: 2, kind: input, shape index: {}]
  %s3 = inlined_call_operand.vmem [shape: f32[32,16], index: 3, kind: input, shape index: {}]
  %s4 = inlined_call_operand.vmem [shape: f32[1,32,1], index: 4, kind: input, shape index: {}]
  %s5 = inlined_call_operand.vmem [shape: f32[1,32,1], index: 5, kind: input, shape index: {}]
  %s6 = inlined_call_operand.vmem [shape: f32[72,32], index: 6, kind: input, shape index: {}]
  %s7 = inlined_call_operand.vmem [shape: f32[9,1,256], index: 7, kind: input, shape index: {}]
  %s8 = inlined_call_operand.vmem [shape: f32[2,8,256], index: 8, kind: output, shape index: {}]
  %s9 = sld [smem:[#allocation0]]
  $region42: #{bottleneck_forward.1} parent=0
    _
  %s11 = ssub.s32 1, %s9
  %s12 = scalar_select 0, %s11, %s9
  // Predicated region
  $region2: #{bottleneck_forward.1} parent=0 // pred_check
    _
  $region3: #{bottleneck_forward.1} parent=0 // pred_check_branch
    %14 = sbr.rel (0) target = $region5
  $region4: #{bottleneck_forward.1} parent=0 // pred_region
    _
  $region5: #{bottleneck_forward.1} parent=0 // pred_fallthru
    _
  // Predicated region
  $region6: #{bottleneck_forward.1} parent=0 // pred_check
    _
  $region7: #{bottleneck_forward.1} parent=0 // pred_check_branch
    %16 = sbr.rel (0) target = $region9
  $region8: #{bottleneck_forward.1} parent=0 // pred_region
    _
  $region9: #{bottleneck_forward.1} parent=0 // pred_fallthru
    _
  // Predicated region
  $region10: #{bottleneck_forward.1} parent=0 // pred_check
    _
  $region11: #{bottleneck_forward.1} parent=0 // pred_check_branch
    %18 = sbr.rel (0) target = $region13
  $region12: #{bottleneck_forward.1} parent=0 // pred_region
    _
  $region13: #{bottleneck_forward.1} parent=0 // pred_fallthru
    _
  // Predicated region
  $region14: #{bottleneck_forward.1} parent=0 // pred_check
    _
  $region15: #{bottleneck_forward.1} parent=0 // pred_check_branch
    %20 = sbr.rel (0) target = $region17
  $region16: #{bottleneck_forward.1} parent=0 // pred_region
    _
  $region17: #{bottleneck_forward.1} parent=0 // pred_fallthru
    _
  // Predicated region
  $region18: #{bottleneck_forward.1} parent=0 // pred_check
    _
  $region19: #{bottleneck_forward.1} parent=0 // pred_check_branch
    %22 = sbr.rel (0) target = $region21
  $region20: #{bottleneck_forward.1} parent=0 // pred_region
    _
  $region21: #{bottleneck_forward.1} parent=0 // pred_fallthru
    _
  // Predicated region
  $region22: #{bottleneck_forward.1} parent=0 // pred_check
    _
  $region23: #{bottleneck_forward.1} parent=0 // pred_check_branch
    %24 = sbr.rel (0) target = $region25
  $region24: #{bottleneck_forward.1} parent=0 // pred_region
    _
  $region25: #{bottleneck_forward.1} parent=0 // pred_fallthru
    _
  // Predicated region
  $region26: #{bottleneck_forward.1} parent=0 // pred_check
    _
  $region27: #{bottleneck_forward.1} parent=0 // pred_check_branch
    %26 = sbr.rel (0) target = $region29
  $region28: #{bottleneck_forward.1} parent=0 // pred_region
    _
  $region29: #{bottleneck_forward.1} parent=0 // pred_fallthru
    _
  // Predicated region
  $region30: #{bottleneck_forward.1} parent=0 // pred_check
    _
  $region31: #{bottleneck_forward.1} parent=0 // pred_check_branch
    %28 = sbr.rel (0) target = $region33
  $region32: #{bottleneck_forward.1} parent=0 // pred_region
    _
  $region33: #{bottleneck_forward.1} parent=0 // pred_fallthru
    _
  %v29 = vld [vmem:[%s0] sm:$0xff]
  %v30 = vld [vmem:[%s0 + $0x8] sm:$0xff]
  %v31 = vld [vmem:[%s0 + $0x10] sm:$0xff]
  %v32 = vld [vmem:[%s0 + $0x18] sm:$0xff]
  %v33 = vld [vmem:[%s0 + $0x20] sm:$0xff]
  %v34 = vld [vmem:[%s0 + $0x28] sm:$0xff]
  %v35 = vld [vmem:[%s0 + $0x30] sm:$0xff]
  %v36 = vld [vmem:[%s0 + $0x38] sm:$0xff]
  %v37 = vadd.f32 %v29, %v30
  %38 = vadd.xlane.f32.xlu0 %v37
  %v39 = vpop.xlane.xlu0 %38
  %v40 = vadd.f32 %v31, %v32
  %41 = vadd.xlane.f32.xlu0 %v40
  %v42 = vpop.xlane.xlu0 %41
  %v43 = vadd.f32 %v33, %v34
  %44 = vadd.xlane.f32.xlu0 %v43
  %v45 = vpop.xlane.xlu0 %44
  %v46 = vadd.f32 %v35, %v36
  %47 = vadd.xlane.f32.xlu0 %v46
  %v48 = vpop.xlane.xlu0 %47
  %v49 = vadd.f32 %v39, %v45
  %v50 = vadd.f32 %v42, %v48
  %v51 = vmul.f32 %v49, 0.001953125
  %v52 = vmul.f32 %v50, 0.001953125
  %v53 = vsub.f32 %v29, %v51
  %v54 = vsub.f32 %v30, %v51
  %v55 = vsub.f32 %v31, %v52
  %v56 = vsub.f32 %v32, %v52
  %v57 = vsub.f32 %v33, %v51
  %v58 = vsub.f32 %v34, %v51
  %v59 = vsub.f32 %v35, %v52
  %v60 = vsub.f32 %v36, %v52
  %v61 = vmul.f32 %v53, %v53
  %v62 = vmul.f32 %v54, %v54
  %v63 = vmul.f32 %v55, %v55
  %v64 = vmul.f32 %v56, %v56
  %v65 = vmul.f32 %v57, %v57
  %v66 = vmul.f32 %v58, %v58
  %v67 = vmul.f32 %v59, %v59
  %v68 = vmul.f32 %v60, %v60
  %v69 = vadd.f32 %v61, %v62
  %70 = vadd.xlane.f32.xlu0 %v69
  %v71 = vpop.xlane.xlu0 %70
  %v72 = vadd.f32 %v63, %v64
  %73 = vadd.xlane.f32.xlu0 %v72
  %v74 = vpop.xlane.xlu0 %73
  %v75 = vadd.f32 %v65, %v66
  %76 = vadd.xlane.f32.xlu0 %v75
  %v77 = vpop.xlane.xlu0 %76
  %v78 = vadd.f32 %v67, %v68
  %79 = vadd.xlane.f32.xlu0 %v78
  %v80 = vpop.xlane.xlu0 %79
  %v81 = vadd.f32 %v71, %v77
  %v82 = vadd.f32 %v74, %v80
  %v83 = vmul.f32 %v81, 0.001953125
  %v84 = vmul.f32 %v82, 0.001953125
  %v85 = vld [vmem:[%s1] sm:$0xff]
  %v86 = vld [vmem:[%s1 + $0x8] sm:$0xff]
  %v87 = vld [vmem:[%s2] sm:$0xff]
  %v88 = vld [vmem:[%s2 + $0x8] sm:$0xff]
  %v89 = vadd.f32 %v83, 1e-05
  %v90 = vadd.f32 %v84, 1e-05
  %v91 = vrsqrt.pop %v89
  %v92 = vmul.f32 %v91, %v89
  %v93 = vmul.f32 %v92, %v91
  %v94 = vmul.f32 0.5, %v93
  %v95 = vsub.f32 1.5, %v94
  %v96 = vmul.f32 %v91, %v95
  %v97 = vmul.f32 %v89, %v96
  %vm98 = vcmp.eq.f32.partialorder %v89, inf
  %v99 = vsel %vm98, %v89, %v97
  %vm100 = vcmp.eq.f32.partialorder %v89, 0.0
  %v101 = vand.u32 %v89, 2147483648
  %v102 = vsel %vm100, %v101, %v99
  %v103 = vrsqrt.pop %v90
  %v104 = vmul.f32 %v103, %v90
  %v105 = vmul.f32 %v104, %v103
  %v106 = vmul.f32 0.5, %v105
  %v107 = vsub.f32 1.5, %v106
  %v108 = vmul.f32 %v103, %v107
  %v109 = vmul.f32 %v90, %v108
  %vm110 = vcmp.eq.f32.partialorder %v90, inf
  %v111 = vsel %vm110, %v90, %v109
  %vm112 = vcmp.eq.f32.partialorder %v90, 0.0
  %v113 = vand.u32 %v90, 2147483648
  %v114 = vsel %vm112, %v113, %v111
  %v115 = vrcp.pop %v102
  %v116 = vmul.f32 %v102, %v115
  %v117 = vsub.f32 1.0, %v116
  %v118 = vmul.f32 %v115, %v117
  %v119 = vadd.f32 %v115, %v118
  %vm120 = vweird.f32 %v102
  %vm121 = vweird.f32 %v115
  %vm122 = vmor %vm120, %vm121
  %v123 = vsel %vm122, %v115, %v119
  %v124 = vand.u32 2147483647, %v102
  %vm125 = vcmp.eq.f32.partialorder %v124, 8.507059e+37
  %v126 = vand.u32 %v102, 2147483648
  %v127 = vor.u32 1.1754944e-38, %v126
  %v128 = vsel %vm125, %v127, %v123
  %v129 = vmul.f32 %v85, %v128
  %v130 = vrcp.pop %v114
  %v131 = vmul.f32 %v114, %v130
  %v132 = vsub.f32 1.0, %v131
  %v133 = vmul.f32 %v130, %v132
  %v134 = vadd.f32 %v130, %v133
  %vm135 = vweird.f32 %v114
  %vm136 = vweird.f32 %v130
  %vm137 = vmor %vm135, %vm136
  %v138 = vsel %vm137, %v130, %v134
  %v139 = vand.u32 2147483647, %v114
  %vm140 = vcmp.eq.f32.partialorder %v139, 8.507059e+37
  %v141 = vand.u32 %v114, 2147483648
  %v142 = vor.u32 1.1754944e-38, %v141
  %v143 = vsel %vm140, %v142, %v138
  %v144 = vmul.f32 %v86, %v143
  %v145 = vmul.f32 %v51, %v129
  %v146 = vmul.f32 %v52, %v144
  %v147 = vsub.f32 %v87, %v145
  %v148 = vsub.f32 %v88, %v146
  %150 = vset.pattern.permute.xlu0 0
  %151 = vperm.xlu0 %150, %v129
  %v152 = vpop.permute.xlu0 %151
  %155 = vset.pattern.permute.xlu0 0
  %156 = vperm.xlu0 %155, %v144
  %v157 = vpop.permute.xlu0 %156
  %v159 = vmul.f32 %v29, %v152
  %v160 = vmul.f32 %v30, %v152
  %v161 = vmul.f32 %v31, %v157
  %v162 = vmul.f32 %v32, %v157
  %v163 = vmul.f32 %v33, %v152
  %v164 = vmul.f32 %v34, %v152
  %v165 = vmul.f32 %v35, %v157
  %v166 = vmul.f32 %v36, %v157
  %168 = vset.pattern.permute.xlu0 0
  %169 = vperm.xlu0 %168, %v147
  %v170 = vpop.permute.xlu0 %169
  %173 = vset.pattern.permute.xlu0 0
  %174 = vperm.xlu0 %173, %v148
  %v175 = vpop.permute.xlu0 %174
  %v177 = vadd.f32 %v159, %v170
  %v178 = vadd.f32 %v160, %v170
  %v179 = vadd.f32 %v161, %v175
  %v180 = vadd.f32 %v162, %v175
  %v181 = vadd.f32 %v163, %v170
  %v182 = vadd.f32 %v164, %v170
  %v183 = vadd.f32 %v165, %v175
  %v184 = vadd.f32 %v166, %v175
  %v185 = vmax.f32 %v177, 0.0
  %v186 = vmax.f32 %v178, 0.0
  %v187 = vmax.f32 %v179, 0.0
  %v188 = vmax.f32 %v180, 0.0
  %v189 = vmax.f32 %v181, 0.0
  %v190 = vmax.f32 %v182, 0.0
  %v191 = vmax.f32 %v183, 0.0
  %v192 = vmax.f32 %v184, 0.0
  %v193 = vld [vmem:[%s3] sm:$0xff]
  %v194 = vld [vmem:[%s3 + $0x8] sm:$0xff]
  %v195 = vld [vmem:[%s3 + $0x10] sm:$0xff]
  %v196 = vld [vmem:[%s3 + $0x18] sm:$0xff]
  %vm197 = vcmask 130048
  %v199 = vsel %vm197, %v193, 0
  %v202 = vsel %vm197, %v194, 0
  %v205 = vsel %vm197, %v195, 0
  %v208 = vsel %vm197, %v196, 0
  %210 = vmatpush.msra.mxu0 0.0
  %211 = vmatpush.msra.mxu0 0.0
  %212 = vmatpush.msra.mxu0 0.0
  %213 = vmatpush.msra.mxu0 0.0
  %214 = vmatpush.msra.mxu0 0.0
  %215 = vmatpush.msra.mxu0 0.0
  %216 = vmatpush.msra.mxu0 0.0
  %217 = vmatpush.msra.mxu0 0.0
  %218 = vmatpush.msra.mxu0 0.0
  %219 = vmatpush.msra.mxu0 0.0
  %220 = vmatpush.msra.mxu0 0.0
  %221 = vmatpush.msra.mxu0 0.0
  %222 = vmatpush.msra.mxu0 0.0
  %223 = vmatpush.msra.mxu0 0.0
  %224 = vmatpush.msra.mxu0 %v187
  %225 = vmatpush.msra.mxu0 %v185
  %226 = vmatmul.f32.gmra.mxu0 %v199
  %v227 = vpop.f32.mrf.mxu0
  %v228 = vadd.f32 0.0, %v227
  %229 = vmatmul.f32.gmra.mxu0 %v202
  %v230 = vpop.f32.mrf.mxu0
  %v231 = vadd.f32 0.0, %v230
  %232 = vmatmul.f32.gmra.mxu0 %v205
  %v233 = vpop.f32.mrf.mxu0
  %v234 = vadd.f32 0.0, %v233
  %235 = vmatmul.f32.gmra.mxu0 %v208
  %v236 = vpop.f32.mrf.mxu0
  %v237 = vadd.f32 0.0, %v236
  %238 = vdwg.mxu0
  %239 = vmatpush.msra.mxu0 0.0
  %240 = vmatpush.msra.mxu0 0.0
  %241 = vmatpush.msra.mxu0 0.0
  %242 = vmatpush.msra.mxu0 0.0
  %243 = vmatpush.msra.mxu0 0.0
  %244 = vmatpush.msra.mxu0 0.0
  %245 = vmatpush.msra.mxu0 0.0
  %246 = vmatpush.msra.mxu0 0.0
  %247 = vmatpush.msra.mxu0 0.0
  %248 = vmatpush.msra.mxu0 0.0
  %249 = vmatpush.msra.mxu0 0.0
  %250 = vmatpush.msra.mxu0 0.0
  %251 = vmatpush.msra.mxu0 0.0
  %252 = vmatpush.msra.mxu0 0.0
  %253 = vmatpush.msra.mxu0 %v188
  %254 = vmatpush.msra.mxu0 %v186
  %255 = vmatmul.f32.gmra.mxu0 %v199
  %v256 = vpop.f32.mrf.mxu0
  %v257 = vadd.f32 0.0, %v256
  %258 = vmatmul.f32.gmra.mxu0 %v202
  %v259 = vpop.f32.mrf.mxu0
  %v260 = vadd.f32 0.0, %v259
  %261 = vmatmul.f32.gmra.mxu0 %v205
  %v262 = vpop.f32.mrf.mxu0
  %v263 = vadd.f32 0.0, %v262
  %264 = vmatmul.f32.gmra.mxu0 %v208
  %v265 = vpop.f32.mrf.mxu0
  %v266 = vadd.f32 0.0, %v265
  %267 = vdwg.mxu0
  %268 = vmatpush.msra.mxu0 0.0
  %269 = vmatpush.msra.mxu0 0.0
  %270 = vmatpush.msra.mxu0 0.0
  %271 = vmatpush.msra.mxu0 0.0
  %272 = vmatpush.msra.mxu0 0.0
  %273 = vmatpush.msra.mxu0 0.0
  %274 = vmatpush.msra.mxu0 0.0
  %275 = vmatpush.msra.mxu0 0.0
  %276 = vmatpush.msra.mxu0 0.0
  %277 = vmatpush.msra.mxu0 0.0
  %278 = vmatpush.msra.mxu0 0.0
  %279 = vmatpush.msra.mxu0 0.0
  %280 = vmatpush.msra.mxu0 0.0
  %281 = vmatpush.msra.mxu0 0.0
  %282 = vmatpush.msra.mxu0 %v191
  %283 = vmatpush.msra.mxu0 %v189
  %284 = vmatmul.f32.gmra.mxu0 %v199
  %v285 = vpop.f32.mrf.mxu0
  %v286 = vadd.f32 0.0, %v285
  %287 = vmatmul.f32.gmra.mxu0 %v202
  %v288 = vpop.f32.mrf.mxu0
  %v289 = vadd.f32 0.0, %v288
  %290 = vmatmul.f32.gmra.mxu0 %v205
  %v291 = vpop.f32.mrf.mxu0
  %v292 = vadd.f32 0.0, %v291
  %293 = vmatmul.f32.gmra.mxu0 %v208
  %v294 = vpop.f32.mrf.mxu0
  %v295 = vadd.f32 0.0, %v294
  %296 = vdwg.mxu0
  %297 = vmatpush.msra.mxu0 0.0
  %298 = vmatpush.msra.mxu0 0.0
  %299 = vmatpush.msra.mxu0 0.0
  %300 = vmatpush.msra.mxu0 0.0
  %301 = vmatpush.msra.mxu0 0.0
  %302 = vmatpush.msra.mxu0 0.0
  %303 = vmatpush.msra.mxu0 0.0
  %304 = vmatpush.msra.mxu0 0.0
  %305 = vmatpush.msra.mxu0 0.0
  %306 = vmatpush.msra.mxu0 0.0
  %307 = vmatpush.msra.mxu0 0.0
  %308 = vmatpush.msra.mxu0 0.0
  %309 = vmatpush.msra.mxu0 0.0
  %310 = vmatpush.msra.mxu0 0.0
  %311 = vmatpush.msra.mxu0 %v192
  %312 = vmatpush.msra.mxu0 %v190
  %313 = vmatmul.f32.gmra.mxu0 %v199
  %v314 = vpop.f32.mrf.mxu0
  %v315 = vadd.f32 0.0, %v314
  %316 = vmatmul.f32.gmra.mxu0 %v202
  %v317 = vpop.f32.mrf.mxu0
  %v318 = vadd.f32 0.0, %v317
  %319 = vmatmul.f32.gmra.mxu0 %v205
  %v320 = vpop.f32.mrf.mxu0
  %v321 = vadd.f32 0.0, %v320
  %322 = vmatmul.f32.gmra.mxu0 %v208
  %v323 = vpop.f32.mrf.mxu0
  %v324 = vadd.f32 0.0, %v323
  %325 = vdwg.mxu0
  %v326 = vadd.f32 %v228, %v257
  %327 = vadd.xlane.f32.xlu0 %v326
  %v328 = vpop.xlane.xlu0 %327
  %v329 = vadd.f32 %v231, %v260
  %330 = vadd.xlane.f32.xlu0 %v329
  %v331 = vpop.xlane.xlu0 %330
  %v332 = vadd.f32 %v234, %v263
  %333 = vadd.xlane.f32.xlu0 %v332
  %v334 = vpop.xlane.xlu0 %333
  %v335 = vadd.f32 %v237, %v266
  %336 = vadd.xlane.f32.xlu0 %v335
  %v337 = vpop.xlane.xlu0 %336
  %v338 = vadd.f32 %v286, %v315
  %339 = vadd.xlane.f32.xlu0 %v338
  %v340 = vpop.xlane.xlu0 %339
  %v341 = vadd.f32 %v289, %v318
  %342 = vadd.xlane.f32.xlu0 %v341
  %v343 = vpop.xlane.xlu0 %342
  %v344 = vadd.f32 %v292, %v321
  %345 = vadd.xlane.f32.xlu0 %v344
  %v346 = vpop.xlane.xlu0 %345
  %v347 = vadd.f32 %v295, %v324
  %348 = vadd.xlane.f32.xlu0 %v347
  %v349 = vpop.xlane.xlu0 %348
  %v350 = vadd.f32 %v328, %v340
  %v351 = vadd.f32 %v331, %v343
  %v352 = vadd.f32 %v334, %v346
  %v353 = vadd.f32 %v337, %v349
  %v354 = vmul.f32 %v350, 0.001953125
  %v355 = vmul.f32 %v351, 0.001953125
  %v356 = vmul.f32 %v352, 0.001953125
  %v357 = vmul.f32 %v353, 0.001953125
  %v358 = vsub.f32 %v228, %v354
  %v359 = vsub.f32 %v257, %v354
  %v360 = vsub.f32 %v231, %v355
  %v361 = vsub.f32 %v260, %v355
  %v362 = vsub.f32 %v234, %v356
  %v363 = vsub.f32 %v263, %v356
  %v364 = vsub.f32 %v237, %v357
  %v365 = vsub.f32 %v266, %v357
  %v366 = vsub.f32 %v286, %v354
  %v367 = vsub.f32 %v315, %v354
  %v368 = vsub.f32 %v289, %v355
  %v369 = vsub.f32 %v318, %v355
  %v370 = vsub.f32 %v292, %v356
  %v371 = vsub.f32 %v321, %v356
  %v372 = vsub.f32 %v295, %v357
  %v373 = vsub.f32 %v324, %v357
  %v374 = vmul.f32 %v358, %v358
  %v375 = vmul.f32 %v359, %v359
  %v376 = vmul.f32 %v360, %v360
  %v377 = vmul.f32 %v361, %v361
  %v378 = vmul.f32 %v362, %v362
  %v379 = vmul.f32 %v363, %v363
  %v380 = vmul.f32 %v364, %v364
  %v381 = vmul.f32 %v365, %v365
  %v382 = vmul.f32 %v366, %v366
  %v383 = vmul.f32 %v367, %v367
  %v384 = vmul.f32 %v368, %v368
  %v385 = vmul.f32 %v369, %v369
  %v386 = vmul.f32 %v370, %v370
  %v387 = vmul.f32 %v371, %v371
  %v388 = vmul.f32 %v372, %v372
  %v389 = vmul.f32 %v373, %v373
  %v390 = vadd.f32 %v374, %v375
  %391 = vadd.xlane.f32.xlu0 %v390
  %v392 = vpop.xlane.xlu0 %391
  %v393 = vadd.f32 %v376, %v377
  %394 = vadd.xlane.f32.xlu0 %v393
  %v395 = vpop.xlane.xlu0 %394
  %v396 = vadd.f32 %v378, %v379
  %397 = vadd.xlane.f32.xlu0 %v396
  %v398 = vpop.xlane.xlu0 %397
  %v399 = vadd.f32 %v380, %v381
  %400 = vadd.xlane.f32.xlu0 %v399
  %v401 = vpop.xlane.xlu0 %400
  %v402 = vadd.f32 %v382, %v383
  %403 = vadd.xlane.f32.xlu0 %v402
  %v404 = vpop.xlane.xlu0 %403
  %v405 = vadd.f32 %v384, %v385
  %406 = vadd.xlane.f32.xlu0 %v405
  %v407 = vpop.xlane.xlu0 %406
  %v408 = vadd.f32 %v386, %v387
  %409 = vadd.xlane.f32.xlu0 %v408
  %v410 = vpop.xlane.xlu0 %409
  %v411 = vadd.f32 %v388, %v389
  %412 = vadd.xlane.f32.xlu0 %v411
  %v413 = vpop.xlane.xlu0 %412
  %v414 = vadd.f32 %v392, %v404
  %v415 = vadd.f32 %v395, %v407
  %v416 = vadd.f32 %v398, %v410
  %v417 = vadd.f32 %v401, %v413
  %v418 = vmul.f32 %v414, 0.001953125
  %v419 = vmul.f32 %v415, 0.001953125
  %v420 = vmul.f32 %v416, 0.001953125
  %v421 = vmul.f32 %v417, 0.001953125
  %v422 = vld [vmem:[%s4] sm:$0xff]
  %v423 = vld [vmem:[%s4 + $0x8] sm:$0xff]
  %v424 = vld [vmem:[%s4 + $0x10] sm:$0xff]
  %v425 = vld [vmem:[%s4 + $0x18] sm:$0xff]
  %v426 = vld [vmem:[%s5] sm:$0xff]
  %v427 = vld [vmem:[%s5 + $0x8] sm:$0xff]
  %v428 = vld [vmem:[%s5 + $0x10] sm:$0xff]
  %v429 = vld [vmem:[%s5 + $0x18] sm:$0xff]
  %v430 = vadd.f32 %v418, 1e-05
  %v431 = vadd.f32 %v419, 1e-05
  %v432 = vadd.f32 %v420, 1e-05
  %v433 = vadd.f32 %v421, 1e-05
  %v434 = vrsqrt.pop %v430
  %v435 = vmul.f32 %v434, %v430
  %v436 = vmul.f32 %v435, %v434
  %v437 = vmul.f32 0.5, %v436
  %v438 = vsub.f32 1.5, %v437
  %v439 = vmul.f32 %v434, %v438
  %v440 = vmul.f32 %v430, %v439
  %vm441 = vcmp.eq.f32.partialorder %v430, inf
  %v442 = vsel %vm441, %v430, %v440
  %vm443 = vcmp.eq.f32.partialorder %v430, 0.0
  %v444 = vand.u32 %v430, 2147483648
  %v445 = vsel %vm443, %v444, %v442
  %v446 = vrsqrt.pop %v431
  %v447 = vmul.f32 %v446, %v431
  %v448 = vmul.f32 %v447, %v446
  %v449 = vmul.f32 0.5, %v448
  %v450 = vsub.f32 1.5, %v449
  %v451 = vmul.f32 %v446, %v450
  %v452 = vmul.f32 %v431, %v451
  %vm453 = vcmp.eq.f32.partialorder %v431, inf
  %v454 = vsel %vm453, %v431, %v452
  %vm455 = vcmp.eq.f32.partialorder %v431, 0.0
  %v456 = vand.u32 %v431, 2147483648
  %v457 = vsel %vm455, %v456, %v454
  %v458 = vrsqrt.pop %v432
  %v459 = vmul.f32 %v458, %v432
  %v460 = vmul.f32 %v459, %v458
  %v461 = vmul.f32 0.5, %v460
  %v462 = vsub.f32 1.5, %v461
  %v463 = vmul.f32 %v458, %v462
  %v464 = vmul.f32 %v432, %v463
  %vm465 = vcmp.eq.f32.partialorder %v432, inf
  %v466 = vsel %vm465, %v432, %v464
  %vm467 = vcmp.eq.f32.partialorder %v432, 0.0
  %v468 = vand.u32 %v432, 2147483648
  %v469 = vsel %vm467, %v468, %v466
  %v470 = vrsqrt.pop %v433
  %v471 = vmul.f32 %v470, %v433
  %v472 = vmul.f32 %v471, %v470
  %v473 = vmul.f32 0.5, %v472
  %v474 = vsub.f32 1.5, %v473
  %v475 = vmul.f32 %v470, %v474
  %v476 = vmul.f32 %v433, %v475
  %vm477 = vcmp.eq.f32.partialorder %v433, inf
  %v478 = vsel %vm477, %v433, %v476
  %vm479 = vcmp.eq.f32.partialorder %v433, 0.0
  %v480 = vand.u32 %v433, 2147483648
  %v481 = vsel %vm479, %v480, %v478
  %v482 = vrcp.pop %v445
  %v483 = vmul.f32 %v445, %v482
  %v484 = vsub.f32 1.0, %v483
  %v485 = vmul.f32 %v482, %v484
  %v486 = vadd.f32 %v482, %v485
  %vm487 = vweird.f32 %v445
  %vm488 = vweird.f32 %v482
  %vm489 = vmor %vm487, %vm488
  %v490 = vsel %vm489, %v482, %v486
  %v491 = vand.u32 2147483647, %v445
  %vm492 = vcmp.eq.f32.partialorder %v491, 8.507059e+37
  %v493 = vand.u32 %v445, 2147483648
  %v494 = vor.u32 1.1754944e-38, %v493
  %v495 = vsel %vm492, %v494, %v490
  %v496 = vmul.f32 %v422, %v495
  %v497 = vrcp.pop %v457
  %v498 = vmul.f32 %v457, %v497
  %v499 = vsub.f32 1.0, %v498
  %v500 = vmul.f32 %v497, %v499
  %v501 = vadd.f32 %v497, %v500
  %vm502 = vweird.f32 %v457
  %vm503 = vweird.f32 %v497
  %vm504 = vmor %vm502, %vm503
  %v505 = vsel %vm504, %v497, %v501
  %v506 = vand.u32 2147483647, %v457
  %vm507 = vcmp.eq.f32.partialorder %v506, 8.507059e+37
  %v508 = vand.u32 %v457, 2147483648
  %v509 = vor.u32 1.1754944e-38, %v508
  %v510 = vsel %vm507, %v509, %v505
  %v511 = vmul.f32 %v423, %v510
  %v512 = vrcp.pop %v469
  %v513 = vmul.f32 %v469, %v512
  %v514 = vsub.f32 1.0, %v513
  %v515 = vmul.f32 %v512, %v514
  %v516 = vadd.f32 %v512, %v515
  %vm517 = vweird.f32 %v469
  %vm518 = vweird.f32 %v512
  %vm519 = vmor %vm517, %vm518
  %v520 = vsel %vm519, %v512, %v516
  %v521 = vand.u32 2147483647, %v469
  %vm522 = vcmp.eq.f32.partialorder %v521, 8.507059e+37
  %v523 = vand.u32 %v469, 2147483648
  %v524 = vor.u32 1.1754944e-38, %v523
  %v525 = vsel %vm522, %v524, %v520
  %v526 = vmul.f32 %v424, %v525
  %v527 = vrcp.pop %v481
  %v528 = vmul.f32 %v481, %v527
  %v529 = vsub.f32 1.0, %v528
  %v530 = vmul.f32 %v527, %v529
  %v531 = vadd.f32 %v527, %v530
  %vm532 = vweird.f32 %v481
  %vm533 = vweird.f32 %v527
  %vm534 = vmor %vm532, %vm533
  %v535 = vsel %vm534, %v527, %v531
  %v536 = vand.u32 2147483647, %v481
  %vm537 = vcmp.eq.f32.partialorder %v536, 8.507059e+37
  %v538 = vand.u32 %v481, 2147483648
  %v539 = vor.u32 1.1754944e-38, %v538
  %v540 = vsel %vm537, %v539, %v535
  %v541 = vmul.f32 %v425, %v540
  %v542 = vmul.f32 %v354, %v496
  %v543 = vmul.f32 %v355, %v511
  %v544 = vmul.f32 %v356, %v526
  %v545 = vmul.f32 %v357, %v541
  %v546 = vsub.f32 %v426, %v542
  %v547 = vsub.f32 %v427, %v543
  %v548 = vsub.f32 %v428, %v544
  %v549 = vsub.f32 %v429, %v545
  %551 = vset.pattern.permute.xlu0 0
  %552 = vperm.xlu0 %551, %v496
  %v553 = vpop.permute.xlu0 %552
  %556 = vset.pattern.permute.xlu0 0
  %557 = vperm.xlu0 %556, %v511
  %v558 = vpop.permute.xlu0 %557
  %561 = vset.pattern.permute.xlu0 0
  %562 = vperm.xlu0 %561, %v526
  %v563 = vpop.permute.xlu0 %562
  %566 = vset.pattern.permute.xlu0 0
  %567 = vperm.xlu0 %566, %v541
  %v568 = vpop.permute.xlu0 %567
  %v570 = vmul.f32 %v228, %v553
  %v571 = vmul.f32 %v257, %v553
  %v572 = vmul.f32 %v231, %v558
  %v573 = vmul.f32 %v260, %v558
  %v574 = vmul.f32 %v234, %v563
  %v575 = vmul.f32 %v263, %v563
  %v576 = vmul.f32 %v237, %v568
  %v577 = vmul.f32 %v266, %v568
  %v578 = vmul.f32 %v286, %v553
  %v579 = vmul.f32 %v315, %v553
  %v580 = vmul.f32 %v289, %v558
  %v581 = vmul.f32 %v318, %v558
  %v582 = vmul.f32 %v292, %v563
  %v583 = vmul.f32 %v321, %v563
  %v584 = vmul.f32 %v295, %v568
  %v585 = vmul.f32 %v324, %v568
  %587 = vset.pattern.permute.xlu0 0
  %588 = vperm.xlu0 %587, %v546
  %v589 = vpop.permute.xlu0 %588
  %592 = vset.pattern.permute.xlu0 0
  %593 = vperm.xlu0 %592, %v547
  %v594 = vpop.permute.xlu0 %593
  %597 = vset.pattern.permute.xlu0 0
  %598 = vperm.xlu0 %597, %v548
  %v599 = vpop.permute.xlu0 %598
  %602 = vset.pattern.permute.xlu0 0
  %603 = vperm.xlu0 %602, %v549
  %v604 = vpop.permute.xlu0 %603
  %v606 = vadd.f32 %v570, %v589
  %v607 = vadd.f32 %v571, %v589
  %v608 = vadd.f32 %v572, %v594
  %v609 = vadd.f32 %v573, %v594
  %v610 = vadd.f32 %v574, %v599
  %v611 = vadd.f32 %v575, %v599
  %v612 = vadd.f32 %v576, %v604
  %v613 = vadd.f32 %v577, %v604
  %v614 = vadd.f32 %v578, %v589
  %v615 = vadd.f32 %v579, %v589
  %v616 = vadd.f32 %v580, %v594
  %v617 = vadd.f32 %v581, %v594
  %v618 = vadd.f32 %v582, %v599
  %v619 = vadd.f32 %v583, %v599
  %v620 = vadd.f32 %v584, %v604
  %v621 = vadd.f32 %v585, %v604
  %v622 = vmax.f32 %v606, 0.0
  %v623 = vmax.f32 %v607, 0.0
  %v624 = vmax.f32 %v608, 0.0
  %v625 = vmax.f32 %v609, 0.0
  %v626 = vmax.f32 %v610, 0.0
  %v627 = vmax.f32 %v611, 0.0
  %v628 = vmax.f32 %v612, 0.0
  %v629 = vmax.f32 %v613, 0.0
  %v630 = vmax.f32 %v614, 0.0
  %v631 = vmax.f32 %v615, 0.0
  %v632 = vmax.f32 %v616, 0.0
  %v633 = vmax.f32 %v617, 0.0
  %v634 = vmax.f32 %v618, 0.0
  %v635 = vmax.f32 %v619, 0.0
  %v636 = vmax.f32 %v620, 0.0
  %v637 = vmax.f32 %v621, 0.0
  %v638 = vld [vmem:[%s6] sm:$0xff]
  %v639 = vld [vmem:[%s6 + $0x8] sm:$0xff]
  %v640 = vld [vmem:[%s6 + $0x10] sm:$0xff]
  %v641 = vld [vmem:[%s6 + $0x18] sm:$0xff]
  %v642 = vld [vmem:[%s6 + $0x20] sm:$0xff]
  %v643 = vld [vmem:[%s6 + $0x28] sm:$0xff]
  %v644 = vld [vmem:[%s6 + $0x30] sm:$0xff]
  %v645 = vld [vmem:[%s6 + $0x38] sm:$0xff]
  %v646 = vld [vmem:[%s6 + $0x40] sm:$0xff]
  %vm647 = vcmask 261120
  %v649 = vsel %vm647, %v638, 0
  %v652 = vsel %vm647, %v639, 0
  %v655 = vsel %vm647, %v640, 0
  %v658 = vsel %vm647, %v641, 0
  %v661 = vsel %vm647, %v642, 0
  %v664 = vsel %vm647, %v643, 0
  %v667 = vsel %vm647, %v644, 0
  %v670 = vsel %vm647, %v645, 0
  %v673 = vsel %vm647, %v646, 0
  %675 = vmatpush.msra.mxu0 0.0
  %676 = vmatpush.msra.mxu0 0.0
  %677 = vmatpush.msra.mxu0 0.0
  %678 = vmatpush.msra.mxu0 0.0
  %679 = vmatpush.msra.mxu0 0.0
  %680 = vmatpush.msra.mxu0 0.0
  %681 = vmatpush.msra.mxu0 0.0
  %682 = vmatpush.msra.mxu0 0.0
  %683 = vmatpush.msra.mxu0 0.0
  %684 = vmatpush.msra.mxu0 0.0
  %685 = vmatpush.msra.mxu0 0.0
  %686 = vmatpush.msra.mxu0 0.0
  %687 = vmatpush.msra.mxu0 %v628
  %688 = vmatpush.msra.mxu0 %v626
  %689 = vmatpush.msra.mxu0 %v624
  %690 = vmatpush.msra.mxu0 %v622
  %691 = vmatmul.f32.gmra.mxu0 %v649
  %v692 = vpop.f32.mrf.mxu0
  %v693 = vadd.f32 0.0, %v692
  %694 = vmatmul.f32.gmra.mxu0 %v652
  %v695 = vpop.f32.mrf.mxu0
  %v696 = vadd.f32 0.0, %v695
  %697 = vmatmul.f32.gmra.mxu0 %v655
  %v698 = vpop.f32.mrf.mxu0
  %v699 = vadd.f32 0.0, %v698
  %700 = vmatmul.f32.gmra.mxu0 %v658
  %v701 = vpop.f32.mrf.mxu0
  %v702 = vadd.f32 0.0, %v701
  %703 = vmatmul.f32.gmra.mxu0 %v661
  %v704 = vpop.f32.mrf.mxu0
  %v705 = vadd.f32 0.0, %v704
  %706 = vmatmul.f32.gmra.mxu0 %v664
  %v707 = vpop.f32.mrf.mxu0
  %v708 = vadd.f32 0.0, %v707
  %709 = vmatmul.f32.gmra.mxu0 %v667
  %v710 = vpop.f32.mrf.mxu0
  %v711 = vadd.f32 0.0, %v710
  %712 = vmatmul.f32.gmra.mxu0 %v670
  %v713 = vpop.f32.mrf.mxu0
  %v714 = vadd.f32 0.0, %v713
  %715 = vmatmul.f32.gmra.mxu0 %v673
  %v716 = vpop.f32.mrf.mxu0
  %v717 = vadd.f32 0.0, %v716
  %718 = vdwg.mxu0
  %719 = vmatpush.msra.mxu0 0.0
  %720 = vmatpush.msra.mxu0 0.0
  %721 = vmatpush.msra.mxu0 0.0
  %722 = vmatpush.msra.mxu0 0.0
  %723 = vmatpush.msra.mxu0 0.0
  %724 = vmatpush.msra.mxu0 0.0
  %725 = vmatpush.msra.mxu0 0.0
  %726 = vmatpush.msra.mxu0 0.0
  %727 = vmatpush.msra.mxu0 0.0
  %728 = vmatpush.msra.mxu0 0.0
  %729 = vmatpush.msra.mxu0 0.0
  %730 = vmatpush.msra.mxu0 0.0
  %731 = vmatpush.msra.mxu0 %v629
  %732 = vmatpush.msra.mxu0 %v627
  %733 = vmatpush.msra.mxu0 %v625
  %734 = vmatpush.msra.mxu0 %v623
  %735 = vmatmul.f32.gmra.mxu0 %v649
  %v736 = vpop.f32.mrf.mxu0
  %v737 = vadd.f32 0.0, %v736
  %738 = vmatmul.f32.gmra.mxu0 %v652
  %v739 = vpop.f32.mrf.mxu0
  %v740 = vadd.f32 0.0, %v739
  %741 = vmatmul.f32.gmra.mxu0 %v655
  %v742 = vpop.f32.mrf.mxu0
  %v743 = vadd.f32 0.0, %v742
  %744 = vmatmul.f32.gmra.mxu0 %v658
  %v745 = vpop.f32.mrf.mxu0
  %v746 = vadd.f32 0.0, %v745
  %747 = vmatmul.f32.gmra.mxu0 %v661
  %v748 = vpop.f32.mrf.mxu0
  %v749 = vadd.f32 0.0, %v748
  %750 = vmatmul.f32.gmra.mxu0 %v664
  %v751 = vpop.f32.mrf.mxu0
  %v752 = vadd.f32 0.0, %v751
  %753 = vmatmul.f32.gmra.mxu0 %v667
  %v754 = vpop.f32.mrf.mxu0
  %v755 = vadd.f32 0.0, %v754
  %756 = vmatmul.f32.gmra.mxu0 %v670
  %v757 = vpop.f32.mrf.mxu0
  %v758 = vadd.f32 0.0, %v757
  %759 = vmatmul.f32.gmra.mxu0 %v673
  %v760 = vpop.f32.mrf.mxu0
  %v761 = vadd.f32 0.0, %v760
  %762 = vdwg.mxu0
  %763 = vmatpush.msra.mxu0 0.0
  %764 = vmatpush.msra.mxu0 0.0
  %765 = vmatpush.msra.mxu0 0.0
  %766 = vmatpush.msra.mxu0 0.0
  %767 = vmatpush.msra.mxu0 0.0
  %768 = vmatpush.msra.mxu0 0.0
  %769 = vmatpush.msra.mxu0 0.0
  %770 = vmatpush.msra.mxu0 0.0
  %771 = vmatpush.msra.mxu0 0.0
  %772 = vmatpush.msra.mxu0 0.0
  %773 = vmatpush.msra.mxu0 0.0
  %774 = vmatpush.msra.mxu0 0.0
  %775 = vmatpush.msra.mxu0 %v636
  %776 = vmatpush.msra.mxu0 %v634
  %777 = vmatpush.msra.mxu0 %v632
  %778 = vmatpush.msra.mxu0 %v630
  %779 = vmatmul.f32.gmra.mxu0 %v649
  %v780 = vpop.f32.mrf.mxu0
  %v781 = vadd.f32 0.0, %v780
  %782 = vmatmul.f32.gmra.mxu0 %v652
  %v783 = vpop.f32.mrf.mxu0
  %v784 = vadd.f32 0.0, %v783
  %785 = vmatmul.f32.gmra.mxu0 %v655
  %v786 = vpop.f32.mrf.mxu0
  %v787 = vadd.f32 0.0, %v786
  %788 = vmatmul.f32.gmra.mxu0 %v658
  %v789 = vpop.f32.mrf.mxu0
  %v790 = vadd.f32 0.0, %v789
  %791 = vmatmul.f32.gmra.mxu0 %v661
  %v792 = vpop.f32.mrf.mxu0
  %v793 = vadd.f32 0.0, %v792
  %794 = vmatmul.f32.gmra.mxu0 %v664
  %v795 = vpop.f32.mrf.mxu0
  %v796 = vadd.f32 0.0, %v795
  %797 = vmatmul.f32.gmra.mxu0 %v667
  %v798 = vpop.f32.mrf.mxu0
  %v799 = vadd.f32 0.0, %v798
  %800 = vmatmul.f32.gmra.mxu0 %v670
  %v801 = vpop.f32.mrf.mxu0
  %v802 = vadd.f32 0.0, %v801
  %803 = vmatmul.f32.gmra.mxu0 %v673
  %v804 = vpop.f32.mrf.mxu0
  %v805 = vadd.f32 0.0, %v804
  %806 = vdwg.mxu0
  %807 = vmatpush.msra.mxu0 0.0
  %808 = vmatpush.msra.mxu0 0.0
  %809 = vmatpush.msra.mxu0 0.0
  %810 = vmatpush.msra.mxu0 0.0
  %811 = vmatpush.msra.mxu0 0.0
  %812 = vmatpush.msra.mxu0 0.0
  %813 = vmatpush.msra.mxu0 0.0
  %814 = vmatpush.msra.mxu0 0.0
  %815 = vmatpush.msra.mxu0 0.0
  %816 = vmatpush.msra.mxu0 0.0
  %817 = vmatpush.msra.mxu0 0.0
  %818 = vmatpush.msra.mxu0 0.0
  %819 = vmatpush.msra.mxu0 %v637
  %820 = vmatpush.msra.mxu0 %v635
  %821 = vmatpush.msra.mxu0 %v633
  %822 = vmatpush.msra.mxu0 %v631
  %823 = vmatmul.f32.gmra.mxu0 %v649
  %v824 = vpop.f32.mrf.mxu0
  %v825 = vadd.f32 0.0, %v824
  %826 = vmatmul.f32.gmra.mxu0 %v652
  %v827 = vpop.f32.mrf.mxu0
  %v828 = vadd.f32 0.0, %v827
  %829 = vmatmul.f32.gmra.mxu0 %v655
  %v830 = vpop.f32.mrf.mxu0
  %v831 = vadd.f32 0.0, %v830
  %832 = vmatmul.f32.gmra.mxu0 %v658
  %v833 = vpop.f32.mrf.mxu0
  %v834 = vadd.f32 0.0, %v833
  %835 = vmatmul.f32.gmra.mxu0 %v661
  %v836 = vpop.f32.mrf.mxu0
  %v837 = vadd.f32 0.0, %v836
  %838 = vmatmul.f32.gmra.mxu0 %v664
  %v839 = vpop.f32.mrf.mxu0
  %v840 = vadd.f32 0.0, %v839
  %841 = vmatmul.f32.gmra.mxu0 %v667
  %v842 = vpop.f32.mrf.mxu0
  %v843 = vadd.f32 0.0, %v842
  %844 = vmatmul.f32.gmra.mxu0 %v670
  %v845 = vpop.f32.mrf.mxu0
  %v846 = vadd.f32 0.0, %v845
  %847 = vmatmul.f32.gmra.mxu0 %v673
  %v848 = vpop.f32.mrf.mxu0
  %v849 = vadd.f32 0.0, %v848
  %850 = vdwg.mxu0
  %851 = vrot.lane.b32.xlu0 %v693, 17
  %v852 = vpop.permute.xlu0 %851
  %853 = vrot.lane.b32.xlu0 %v781, 17
  %v854 = vpop.permute.xlu0 %853
  %855 = vrot.lane.b32.xlu0 %v737, 17
  %v856 = vpop.permute.xlu0 %855
  %857 = vrot.lane.b32.xlu0 %v825, 17
  %v858 = vpop.permute.xlu0 %857
  %v859 = vlaneseq
  %v860 = vand.u32 %v859, 127
  %vm861 = vcmp.lt.s32.totalorder %v860, 17
  %v862 = vsel %vm861, %v852, %v856
  %v863 = vsel %vm861, %v854, %v858
  %v864 = vsel %vm861, %v856, %v852
  %v865 = vsel %vm861, %v858, %v854
  %v866 = vld [vmem:[%s7] sm:$0x3]
  %v868 = vperm.slane %v866, 0
  %v869 = vperm.slane %v866, 1
  %v872 = vmul.f32 %v864, %v868
  %v873 = vmul.f32 %v862, %v869
  %v874 = vmul.f32 %v865, %v868
  %v875 = vmul.f32 %v863, %v869
  %v876 = vadd.f32 %v872, 0.0
  %v877 = vadd.f32 %v873, 0.0
  %v878 = vadd.f32 %v874, 0.0
  %v879 = vadd.f32 %v875, 0.0
  %880 = vrot.lane.b32.xlu0 %v696, 16
  %v881 = vpop.permute.xlu0 %880
  %882 = vrot.lane.b32.xlu0 %v784, 16
  %v883 = vpop.permute.xlu0 %882
  %884 = vrot.lane.b32.xlu0 %v740, 16
  %v885 = vpop.permute.xlu0 %884
  %886 = vrot.lane.b32.xlu0 %v828, 16
  %v887 = vpop.permute.xlu0 %886
  %vm888 = vcmp.lt.s32.totalorder %v860, 16
  %v889 = vsel %vm888, %v881, %v885
  %v890 = vsel %vm888, %v883, %v887
  %v891 = vsel %vm888, %v885, %v881
  %v892 = vsel %vm888, %v887, %v883
  %s893 = scalar_lea.vmem %s7, 2
  %v894 = vld [vmem:[%s893] sm:$0x3]
  %v896 = vperm.slane %v894, 0
  %v897 = vperm.slane %v894, 1
  %v900 = vmul.f32 %v891, %v896
  %v901 = vmul.f32 %v889, %v897
  %v902 = vmul.f32 %v892, %v896
  %v903 = vmul.f32 %v890, %v897
  %v904 = vadd.f32 %v876, %v900
  %v905 = vadd.f32 %v877, %v901
  %v906 = vadd.f32 %v878, %v902
  %v907 = vadd.f32 %v879, %v903
  %908 = vrot.lane.b32.xlu0 %v699, 15
  %v909 = vpop.permute.xlu0 %908
  %910 = vrot.lane.b32.xlu0 %v787, 15
  %v911 = vpop.permute.xlu0 %910
  %912 = vrot.lane.b32.xlu0 %v743, 15
  %v913 = vpop.permute.xlu0 %912
  %914 = vrot.lane.b32.xlu0 %v831, 15
  %v915 = vpop.permute.xlu0 %914
  %vm916 = vcmp.lt.s32.totalorder %v860, 15
  %v917 = vsel %vm916, %v909, %v913
  %v918 = vsel %vm916, %v911, %v915
  %v919 = vsel %vm916, %v913, %v909
  %v920 = vsel %vm916, %v915, %v911
  %s921 = scalar_lea.vmem %s7, 4
  %v922 = vld [vmem:[%s921] sm:$0x3]
  %v924 = vperm.slane %v922, 0
  %v925 = vperm.slane %v922, 1
  %v928 = vmul.f32 %v919, %v924
  %v929 = vmul.f32 %v917, %v925
  %v930 = vmul.f32 %v920, %v924
  %v931 = vmul.f32 %v918, %v925
  %v932 = vadd.f32 %v904, %v928
  %v933 = vadd.f32 %v905, %v929
  %v934 = vadd.f32 %v906, %v930
  %v935 = vadd.f32 %v907, %v931
  %936 = vrot.lane.b32.xlu0 %v702, 1
  %v937 = vpop.permute.xlu0 %936
  %938 = vrot.lane.b32.xlu0 %v790, 1
  %v939 = vpop.permute.xlu0 %938
  %940 = vrot.lane.b32.xlu0 %v746, 1
  %v941 = vpop.permute.xlu0 %940
  %942 = vrot.lane.b32.xlu0 %v834, 1
  %v943 = vpop.permute.xlu0 %942
  %vm944 = vcmp.lt.s32.totalorder %v860, 1
  %v945 = vsel %vm944, %v937, %v941
  %v946 = vsel %vm944, %v939, %v943
  %v947 = vsel %vm944, %v941, %v937
  %v948 = vsel %vm944, %v943, %v939
  %s949 = scalar_lea.vmem %s7, 6
  %v950 = vld [vmem:[%s949] sm:$0x3]
  %v952 = vperm.slane %v950, 0
  %v953 = vperm.slane %v950, 1
  %v956 = vmul.f32 %v947, %v952
  %v957 = vmul.f32 %v945, %v953
  %v958 = vmul.f32 %v948, %v952
  %v959 = vmul.f32 %v946, %v953
  %v960 = vadd.f32 %v932, %v956
  %v961 = vadd.f32 %v933, %v957
  %v962 = vadd.f32 %v934, %v958
  %v963 = vadd.f32 %v935, %v959
  %v964 = vadd.f32 %v960, %v705
  %v965 = vadd.f32 %v961, %v749
  %v966 = vadd.f32 %v962, %v793
  %v967 = vadd.f32 %v963, %v837
  %968 = vrot.lane.b32.xlu0 %v708, 127
  %v969 = vpop.permute.xlu0 %968
  %970 = vrot.lane.b32.xlu0 %v796, 127
  %v971 = vpop.permute.xlu0 %970
  %972 = vrot.lane.b32.xlu0 %v752, 127
  %v973 = vpop.permute.xlu0 %972
  %974 = vrot.lane.b32.xlu0 %v840, 127
  %v975 = vpop.permute.xlu0 %974
  %vm976 = vcmp.lt.s32.totalorder %v860, 127
  %v977 = vsel %vm976, %v969, %v973
  %v978 = vsel %vm976, %v971, %v975
  %v979 = vsel %vm976, %v973, %v969
  %v980 = vsel %vm976, %v975, %v971
  %s981 = scalar_lea.vmem %s7, 10
  %v982 = vld [vmem:[%s981] sm:$0x3]
  %v984 = vperm.slane %v982, 0
  %v985 = vperm.slane %v982, 1
  %v988 = vmul.f32 %v977, %v984
  %v989 = vmul.f32 %v979, %v985
  %v990 = vmul.f32 %v978, %v984
  %v991 = vmul.f32 %v980, %v985
  %v992 = vadd.f32 %v964, %v988
  %v993 = vadd.f32 %v965, %v989
  %v994 = vadd.f32 %v966, %v990
  %v995 = vadd.f32 %v967, %v991
  %996 = vrot.lane.b32.xlu0 %v711, 113
  %v997 = vpop.permute.xlu0 %996
  %998 = vrot.lane.b32.xlu0 %v799, 113
  %v999 = vpop.permute.xlu0 %998
  %1000 = vrot.lane.b32.xlu0 %v755, 113
  %v1001 = vpop.permute.xlu0 %1000
  %1002 = vrot.lane.b32.xlu0 %v843, 113
  %v1003 = vpop.permute.xlu0 %1002
  %vm1004 = vcmp.lt.s32.totalorder %v860, 113
  %v1005 = vsel %vm1004, %v997, %v1001
  %v1006 = vsel %vm1004, %v999, %v1003
  %v1007 = vsel %vm1004, %v1001, %v997
  %v1008 = vsel %vm1004, %v1003, %v999
  %s1009 = scalar_lea.vmem %s7, 12
  %v1010 = vld [vmem:[%s1009] sm:$0x3]
  %v1012 = vperm.slane %v1010, 0
  %v1013 = vperm.slane %v1010, 1
  %v1016 = vmul.f32 %v1005, %v1012
  %v1017 = vmul.f32 %v1007, %v1013
  %v1018 = vmul.f32 %v1006, %v1012
  %v1019 = vmul.f32 %v1008, %v1013
  %v1020 = vadd.f32 %v992, %v1016
  %v1021 = vadd.f32 %v993, %v1017
  %v1022 = vadd.f32 %v994, %v1018
  %v1023 = vadd.f32 %v995, %v1019
  %1024 = vrot.lane.b32.xlu0 %v714, 112
  %v1025 = vpop.permute.xlu0 %1024
  %1026 = vrot.lane.b32.xlu0 %v802, 112
  %v1027 = vpop.permute.xlu0 %1026
  %1028 = vrot.lane.b32.xlu0 %v758, 112
  %v1029 = vpop.permute.xlu0 %1028
  %1030 = vrot.lane.b32.xlu0 %v846, 112
  %v1031 = vpop.permute.xlu0 %1030
  %vm1032 = vcmp.lt.s32.totalorder %v860, 112
  %v1033 = vsel %vm1032, %v1025, %v1029
  %v1034 = vsel %vm1032, %v1027, %v1031
  %v1035 = vsel %vm1032, %v1029, %v1025
  %v1036 = vsel %vm1032, %v1031, %v1027
  %s1037 = scalar_lea.vmem %s7, 14
  %v1038 = vld [vmem:[%s1037] sm:$0x3]
  %v1040 = vperm.slane %v1038, 0
  %v1041 = vperm.slane %v1038, 1
  %v1044 = vmul.f32 %v1033, %v1040
  %v1045 = vmul.f32 %v1035, %v1041
  %v1046 = vmul.f32 %v1034, %v1040
  %v1047 = vmul.f32 %v1036, %v1041
  %v1048 = vadd.f32 %v1020, %v1044
  %v1049 = vadd.f32 %v1021, %v1045
  %v1050 = vadd.f32 %v1022, %v1046
  %v1051 = vadd.f32 %v1023, %v1047
  %1052 = vrot.lane.b32.xlu0 %v717, 111
  %v1053 = vpop.permute.xlu0 %1052
  %1054 = vrot.lane.b32.xlu0 %v805, 111
  %v1055 = vpop.permute.xlu0 %1054
  %1056 = vrot.lane.b32.xlu0 %v761, 111
  %v1057 = vpop.permute.xlu0 %1056
  %1058 = vrot.lane.b32.xlu0 %v849, 111
  %v1059 = vpop.permute.xlu0 %1058
  %vm1060 = vcmp.lt.s32.totalorder %v860, 111
  %v1061 = vsel %vm1060, %v1053, %v1057
  %v1062 = vsel %vm1060, %v1055, %v1059
  %v1063 = vsel %vm1060, %v1057, %v1053
  %v1064 = vsel %vm1060, %v1059, %v1055
  %s1065 = scalar_lea.vmem %s7, 16
  %v1066 = vld [vmem:[%s1065] sm:$0x3]
  %v1068 = vperm.slane %v1066, 0
  %v1069 = vperm.slane %v1066, 1
  %v1072 = vmul.f32 %v1061, %v1068
  %v1073 = vmul.f32 %v1063, %v1069
  %v1074 = vmul.f32 %v1062, %v1068
  %v1075 = vmul.f32 %v1064, %v1069
  %v1076 = vadd.f32 %v1048, %v1072
  %v1077 = vadd.f32 %v1049, %v1073
  %v1078 = vadd.f32 %v1050, %v1074
  %v1079 = vadd.f32 %v1051, %v1075
  %1080 = vst [vmem:[%s8] sm:$0xff] %v1076
  %1081 = vst [vmem:[%s8 + $0x8] sm:$0xff] %v1077
  %1082 = vst [vmem:[%s8 + $0x10] sm:$0xff] %v1078
  %1083 = vst [vmem:[%s8 + $0x18] sm:$0xff] %v1079
  // Predicated region
  $region34: #{bottleneck_forward.1} parent=0 // pred_check
    _
  $region35: #{bottleneck_forward.1} parent=0 // pred_check_branch
    %1085 = sbr.rel (0) target = $region37
  $region36: #{bottleneck_forward.1} parent=0 // pred_region
    _
  $region37: #{bottleneck_forward.1} parent=0 // pred_fallthru
    _
  // Predicated region
  $region38: #{bottleneck_forward.1} parent=0 // pred_check
    _
  $region39: #{bottleneck_forward.1} parent=0 // pred_check_branch
    %1087 = sbr.rel (0) target = $region41
  $region40: #{bottleneck_forward.1} parent=0 // pred_region
    _
  $region41: #{bottleneck_forward.1} parent=0 // pred_fallthru
    _

</llo_original>
